<compile_context>
chip_gen: v7x
topology: tpu7x:2x2x1
jax: 0.10.0
libtpu: 0.0.40
codegen_flags: <defaults>
</compile_context>

<pallas_src>
import functools
import random

import numpy as np
import jax
import jax.numpy as jnp
from jax.experimental import pallas as pl
from jax.experimental.pallas import tpu as pltpu


# ----------------------------------------------------------------------------
# Host-side interpolation-weight construction (passed to the kernel as inputs)
# ----------------------------------------------------------------------------
def _interp_matrix(in_size: int, out_size: int, antialias: bool = False) -> np.ndarray:
    """1-D resampling matrix M[out, in].

    antialias=False (or upscaling): torch bilinear, align_corners=False.
    antialias=True and downscaling: torchvision/PIL triangle (tent) filter.
    """
    in_size, out_size = int(in_size), int(out_size)
    m = np.zeros((out_size, in_size), dtype=np.float64)
    scale = in_size / out_size
    if antialias and scale > 1.0:
        support = scale  # bilinear filter support (1.0) * filterscale
        for i in range(out_size):
            center = (i + 0.5) * scale
            lo = max(int(center - support + 0.5), 0)
            hi = min(int(center + support + 0.5), in_size)
            idx = np.arange(lo, hi, dtype=np.float64)
            w = np.maximum(0.0, 1.0 - np.abs((idx + 0.5 - center) / scale))
            s = w.sum()
            if s > 0:
                m[i, lo:hi] = w / s
            else:
                m[i, min(max(int(center), 0), in_size - 1)] = 1.0
    else:
        for i in range(out_size):
            src = max((i + 0.5) * scale - 0.5, 0.0)
            lo = min(int(np.floor(src)), in_size - 1)
            hi = min(lo + 1, in_size - 1)
            frac = src - lo
            m[i, lo] += 1.0 - frac
            m[i, hi] += frac
    return m.astype(np.float32)


@functools.lru_cache(maxsize=None)
def _interp_matrices_device(H, W, out_h, out_w, antialias):
    """Cached device copies: Rh [out_h, H] and Rw^T [W, out_w] (f32)."""
    rh = jnp.asarray(_interp_matrix(H, out_h, antialias))
    rwt = jnp.asarray(_interp_matrix(W, out_w, antialias).T)
    return rh, rwt


def _resize_output_size(h: int, w: int, size):
    """torchvision _compute_resized_output_size rule (int truncation)."""
    if isinstance(size, (tuple, list)):
        if len(size) == 1:
            size = int(size[0])
        else:
            return int(size[0]), int(size[1])
    size = int(size)
    short, long = (w, h) if w <= h else (h, w)
    new_short, new_long = size, int(size * long / short)
    if w <= h:
        new_w, new_h = new_short, new_long
    else:
        new_w, new_h = new_long, new_short
    return new_h, new_w


# ----------------------------------------------------------------------------
# VMEM budget / block sizing
# ----------------------------------------------------------------------------
def _vmem_limit_bytes() -> int:
    """Per-generation scoped-VMEM limit: ~50% of physical (v7x-safe)."""
    try:
        cap = int(pltpu.get_tpu_info().vmem_capacity_bytes)
    except Exception:
        cap = 64 << 20  # conservative fallback (v7x per-TC physical VMEM)
    return max(32 << 20, min(cap // 2, 96 << 20))


def _choose_order(H, W, out_h, out_w) -> bool:
    """True => resize W first. Minimize FLOPs; tie-break on lane density."""
    flops_w_first = H * out_w * (W + out_h)
    flops_h_first = out_h * W * (H + out_w)
    if flops_w_first != flops_h_first:
        return flops_w_first < flops_h_first
    # Tie (e.g. square resize): keep the intermediate's last dim as large as
    # possible (lane-dense stores) -> W-first only when upscaling W.
    return out_w >= W


def _choose_bp(N, H, W, out_h, out_w, itemsize, w_first, vmem_limit) -> int:
    """Planes per grid step, sized to VMEM with >=2 grid steps when possible."""
    inter = H * out_w if w_first else out_h * W
    per_plane = (
        2 * H * W * itemsize              # double-buffered input block
        + 2 * out_h * out_w * itemsize    # double-buffered output block
        + 4 * (H * W                      # in-kernel f32 copy of x
               + inter                    # f32 intermediate
               + out_h * out_w            # f32 result before store cast
               + out_h * H)               # broadcast Rh per plane
    )
    budget = int(vmem_limit * 0.5)        # headroom for weights / scratch
    bp = max(1, budget // max(1, per_plane))
    bp = min(bp, N)
    if N >= 2:
        bp = min(bp, -(-N // 2))          # keep >=2 grid steps (v7x dual-TC)
    return int(max(1, bp))


# ----------------------------------------------------------------------------
# Pallas kernel: separable resize of a block of BP planes (two MXU GEMMs)
# ----------------------------------------------------------------------------
def _make_kernel(BP, H, W, out_h, out_w, w_first):
    def kernel(x_ref, rh_ref, rwt_ref, o_ref):
        # x_ref : [BP, H, W]     native dtype (bf16/f32); cast to f32 in VMEM
        # rh_ref: [out_h, H]     f32 row-interpolation matrix
        # rwt_ref:[W, out_w]     f32 column-interpolation matrix (transposed)
        # o_ref : [BP, out_h, out_w]  same dtype as the input
        x = x_ref[...].astype(jnp.float32)
        rwt = rwt_ref[...]
        # NOTE: Rh/Rw^T have constant index_maps; single-buffering them
        # (pipeline_mode) would save a few KiB of VMEM but is negligible here.
        rh_b = jnp.broadcast_to(rh_ref[...], (BP, out_h, H))
        if w_first:
            # W-resize as one big folded GEMM: M = BP*H.
            t = jnp.dot(x.reshape(BP * H, W), rwt,
                        preferred_element_type=jnp.float32)
            t = t.reshape(BP, H, out_w)
            # H-resize as a batched matmul over planes.
            y = jnp.einsum('noh,nhw->now', rh_b, t,
                           preferred_element_type=jnp.float32)
        else:
            # H-resize first (shrinks the intermediate / keeps it lane-dense).
            t = jnp.einsum('noh,nhw->now', rh_b, x,
                           preferred_element_type=jnp.float32)  # [BP,out_h,W]
            # W-resize as one big folded GEMM: M = BP*out_h.
            y = jnp.dot(t.reshape(BP * out_h, W), rwt,
                        preferred_element_type=jnp.float32)
            y = y.reshape(BP, out_h, out_w)
        o_ref[...] = y.astype(o_ref.dtype)
    return kernel


@functools.lru_cache(maxsize=None)
def _get_resize_fn(N, H, W, out_h, out_w, dtype):
    """Cached, jitted pallas_call for one (N, H, W, out_h, out_w, dtype)."""
    dtype = np.dtype(dtype)
    vmem_limit = _vmem_limit_bytes()
    w_first = _choose_order(H, W, out_h, out_w)
    BP = _choose_bp(N, H, W, out_h, out_w, dtype.itemsize, w_first, vmem_limit)
    num_blocks = pl.cdiv(N, BP)

    call = pl.pallas_call(
        _make_kernel(BP, H, W, out_h, out_w, w_first),
        out_shape=jax.ShapeDtypeStruct((N, out_h, out_w), dtype),
        grid=(num_blocks,),
        in_specs=[
            pl.BlockSpec((BP, H, W), lambda n: (n, 0, 0)),
            pl.BlockSpec((out_h, H), lambda n: (0, 0)),
            pl.BlockSpec((W, out_w), lambda n: (0, 0)),
        ],
        out_specs=pl.BlockSpec((BP, out_h, out_w), lambda n: (n, 0, 0)),
        compiler_params=pltpu.CompilerParams(
            dimension_semantics=("parallel",),   # plane blocks are independent
            vmem_limit_bytes=int(vmem_limit),
        ),
    )
    return jax.jit(call)


def bilinear_resize_pallas(x_nchw, out_h: int, out_w: int, antialias: bool = True):
    """Resize x [B, C, H, W] -> [B, C, out_h, out_w], dtype preserved."""
    B, C, H, W = (int(d) for d in x_nchw.shape)
    N = B * C
    rh, rwt = _interp_matrices_device(H, W, out_h, out_w, bool(antialias))
    fn = _get_resize_fn(N, H, W, int(out_h), int(out_w), x_nchw.dtype)
    out = fn(x_nchw.reshape(N, H, W), rh, rwt)
    return out.reshape(B, C, out_h, out_w)


# ----------------------------------------------------------------------------
# Module-level forward: RandomResize
# ----------------------------------------------------------------------------
def random_resize_forward(x, sizes, p=0.2, rng=None, antialias=True):
    """With prob p resize to a random size from `sizes`, else identity.

    antialias=True matches torchvision's tensor-path default for downscaling.
    """
    rng = random if rng is None else rng
    if rng.random() < p:
        chosen = rng.choice(list(sizes))
        h, w = int(x.shape[2]), int(x.shape[3])
        out_h, out_w = _resize_output_size(h, w, chosen)
        if (out_h, out_w) == (h, w):
            return x  # torchvision Resize is a no-op at identical size
        return bilinear_resize_pallas(x, out_h, out_w, antialias=antialias)
    return x


# ----------------------------------------------------------------------------
# Pure-JAX reference (gather + lerp; independent of the matrix builder)
# ----------------------------------------------------------------------------
def _reference_bilinear_resize(x, out_h, out_w):
    B, C, H, W = x.shape

    def coords(out_size, in_size):
        scale = in_size / out_size
        src = (jnp.arange(out_size, dtype=jnp.float32) + 0.5) * scale - 0.5
        src = jnp.maximum(src, 0.0)
        lo = jnp.minimum(jnp.floor(src).astype(jnp.int32), in_size - 1)
        hi = jnp.minimum(lo + 1, in_size - 1)
        frac = src - lo.astype(jnp.float32)
        return lo, hi, frac

    hlo, hhi, hfrac = coords(out_h, H)
    wlo, whi, wfrac = coords(out_w, W)

    x_lo = jnp.take(x, wlo, axis=3)
    x_hi = jnp.take(x, whi, axis=3)
    xw = x_lo * (1.0 - wfrac) + x_hi * wfrac          # [B, C, H, out_w]

    y_lo = jnp.take(xw, hlo, axis=2)
    y_hi = jnp.take(xw, hhi, axis=2)
    return y_lo * (1.0 - hfrac)[:, None] + y_hi * hfrac[:, None]


if __name__ == "__main__":
    B, C, H, W = 2, 4, 16, 16
    sizes = [8, 32]
    p = 0.2

    key = jax.random.PRNGKey(0)
    x = jax.random.uniform(key, (B, C, H, W), dtype=jnp.float32)

    # 1) Plain-bilinear path vs an independent gather-based reference.
    for s in sizes:
        out_h, out_w = _resize_output_size(H, W, s)
        y = jax.block_until_ready(
            bilinear_resize_pallas(x, out_h, out_w, antialias=False))
        ref = _reference_bilinear_resize(x, out_h, out_w)
        assert y.shape == (B, C, out_h, out_w)
        assert y.dtype == x.dtype
        assert jnp.allclose(y, ref, atol=1e-5, rtol=1e-5), f"mismatch size={s}"

    # 2) Antialiased downscale path (torchvision default): Pallas kernel vs the
    #    same interpolation matrices applied on the host (kernel-path check).
    out_h, out_w = _resize_output_size(H, W, 8)
    y_aa = jax.block_until_ready(
        bilinear_resize_pallas(x, out_h, out_w, antialias=True))
    rh_np = _interp_matrix(H, out_h, antialias=True)
    rw_np = _interp_matrix(W, out_w, antialias=True)
    ref_aa = np.einsum('oh,bchw,vw->bcov', rh_np, np.asarray(x), rw_np)
    assert np.allclose(np.asarray(y_aa), ref_aa, atol=1e-5, rtol=1e-5)

    # 3) Native bf16 input path (no host f32 cast; dtype preserved).
    x_bf16 = x.astype(jnp.bfloat16)
    y_bf = jax.block_until_ready(
        bilinear_resize_pallas(x_bf16, 8, 8, antialias=False))
    assert y_bf.dtype == jnp.bfloat16
    ref_bf = _reference_bilinear_resize(x_bf16.astype(jnp.float32), 8, 8)
    assert jnp.allclose(y_bf.astype(jnp.float32), ref_bf, atol=3e-2, rtol=3e-2)

    # 4) Module semantics: the random branch (host-side Python randomness).
    rng_resize = random.Random(1)   # first random() = 0.134 < p -> resize branch
    y_r = jax.block_until_ready(random_resize_forward(x, sizes, p=p, rng=rng_resize))
    assert y_r.ndim == 4 and y_r.shape[:2] == (B, C)
    assert y_r.shape[2] in sizes and y_r.shape[2] == y_r.shape[3]

    rng_id = random.Random(0)       # first random() = 0.844 > p -> identity branch
    y_i = random_resize_forward(x, sizes, p=p, rng=rng_id)
    assert y_i.shape == x.shape

    print("KERNEL_OK")
</pallas_src>

<mosaic_0001>
module attributes {stable_mosaic.version = 11 : i64} {
  func.func @kernel(%arg0: i32, %arg1: memref<4x16x16xf32, #tpu.memory_space<vmem>>, %arg2: memref<8x16xf32, #tpu.memory_space<vmem>>, %arg3: memref<16x8xf32, #tpu.memory_space<vmem>>, %arg4: memref<4x8x8xf32, #tpu.memory_space<vmem>>) attributes {dimension_semantics = [#tpu.dimension_semantics<parallel>], iteration_bounds = array<i64: 2>, scalar_prefetch = 0 : i64, scratch_operands = 0 : i64, tpu.core_type = #tpu.core_type<tc>, window_params = [{transform_indices = @transform_0, window_bounds = array<i64: 4, 16, 16>}, {pipeline_mode = #tpu.pipeline_mode<synchronous>, transform_indices = @transform_1, window_bounds = array<i64: 8, 16>}, {pipeline_mode = #tpu.pipeline_mode<synchronous>, transform_indices = @transform_2, window_bounds = array<i64: 16, 8>}, {transform_indices = @transform_3, window_bounds = array<i64: 4, 8, 8>}]} {
    %c0 = arith.constant 0 : index
    %c0_0 = arith.constant 0 : index
    %c0_1 = arith.constant 0 : index
    %0 = vector.load %arg1[%c0, %c0_0, %c0_1] : memref<4x16x16xf32, #tpu.memory_space<vmem>>, vector<4x16x16xf32>
    %c0_2 = arith.constant 0 : index
    %c0_3 = arith.constant 0 : index
    %1 = vector.load %arg3[%c0_2, %c0_3] : memref<16x8xf32, #tpu.memory_space<vmem>>, vector<16x8xf32>
    %c0_4 = arith.constant 0 : index
    %c0_5 = arith.constant 0 : index
    %2 = vector.load %arg2[%c0_4, %c0_5] : memref<8x16xf32, #tpu.memory_space<vmem>>, vector<8x16xf32>
    %3 = vector.shape_cast %2 : vector<8x16xf32> to vector<1x8x16xf32>
    %4 = vector.broadcast %3 : vector<1x8x16xf32> to vector<4x8x16xf32>
    "tpu.trace_start"() <{level = 10 : i32, message = "noh,nhw->now"}> : () -> ()
    %cst = arith.constant dense<0.000000e+00> : vector<4x8x16xf32>
    %5 = tpu.matmul %4, %0, %cst {dimension_numbers = #tpu.dot_dimension_numbers<[2], [1], [1], [2], [0, 0, 0, 1, 1, 2], [0], [0]>} : vector<4x8x16xf32>, vector<4x16x16xf32>, vector<4x8x16xf32> -> vector<4x8x16xf32>
    "tpu.trace_stop"() : () -> ()
    %6 = vector.shape_cast %5 : vector<4x8x16xf32> to vector<32x16xf32>
    %cst_6 = arith.constant dense<0.000000e+00> : vector<32x8xf32>
    %7 = tpu.matmul %6, %1, %cst_6 {dimension_numbers = #tpu.dot_dimension_numbers<[1], [0], [0], [1], [0, 0, 1, 1], [], []>} : vector<32x16xf32>, vector<16x8xf32>, vector<32x8xf32> -> vector<32x8xf32>
    %8 = vector.shape_cast %7 : vector<32x8xf32> to vector<4x8x8xf32>
    %c0_7 = arith.constant 0 : index
    %c0_8 = arith.constant 0 : index
    %c0_9 = arith.constant 0 : index
    %9 = vector.load %arg4[%c0_7, %c0_8, %c0_9] : memref<4x8x8xf32, #tpu.memory_space<vmem>>, vector<4x8x8xf32>
    tpu.vector_store %arg4[%c0_7, %c0_8, %c0_9], %8 {strides = array<i32>} : memref<4x8x8xf32, #tpu.memory_space<vmem>>, vector<4x8x8xf32>,
    return
  }
  func.func @transform_0(%arg0: i32) -> (i32, i32, i32) {
    %c0_i32 = arith.constant 0 : i32
    %c0_i32_0 = arith.constant 0 : i32
    %c0_i32_1 = arith.constant 0 : i32
    return %arg0, %c0_i32, %c0_i32_0 : i32, i32, i32
  }
  func.func @transform_1(%arg0: i32) -> (i32, i32) {
    %c0_i32 = arith.constant 0 : i32
    %c0_i32_0 = arith.constant 0 : i32
    %c0_i32_1 = arith.constant 0 : i32
    return %c0_i32, %c0_i32_0 : i32, i32
  }
  func.func @transform_2(%arg0: i32) -> (i32, i32) {
    %c0_i32 = arith.constant 0 : i32
    %c0_i32_0 = arith.constant 0 : i32
    %c0_i32_1 = arith.constant 0 : i32
    return %c0_i32, %c0_i32_0 : i32, i32
  }
  func.func @transform_3(%arg0: i32) -> (i32, i32, i32) {
    %c0_i32 = arith.constant 0 : i32
    %c0_i32_0 = arith.constant 0 : i32
    %c0_i32_1 = arith.constant 0 : i32
    return %arg0, %c0_i32, %c0_i32_0 : i32, i32, i32
  }
}

</mosaic_0001>

<llo_original>
// kernel: tpu_custom_call.1
$region0: #{tpu_custom_call.1}
  #allocation0 [shape = 'u32[]', space=smem, size = 0x4, offset = 0x4, fixed_abs, tag = 'smem constant byte address 0x4 - core index']
  #allocation1 [shape = 'u32[144,128]{1,0:T(1,128)}', space=vmem, size = 0x12000, scoped, tag = 'internal scratch']
  %s0 = inlined_call_operand.hbm [shape: f32[8,16,16], index: 0, kind: input, shape index: {}]
  %s1 = inlined_call_operand.vmem [shape: f32[8,16], index: 1, kind: input, shape index: {}]
  %s2 = inlined_call_operand.vmem [shape: f32[16,8], index: 2, kind: input, shape index: {}]
  %s3 = inlined_call_operand.hbm [shape: f32[8,8,8], index: 3, kind: output, shape index: {}]
  %s4 = sld [smem:[#allocation0]]
  $region49: #{tpu_custom_call.1} parent=0
    _
  %s6 = ssub.s32 1, %s4
  %s7 = scalar_select 0, %s6, %s4
  $region1: #{tpu_custom_call.1} parent=0
    #allocation2 [shape = 'u8[65536]{0}', space=vmem, size = 0x10000, scoped, tag = 'input window, operand 0']
    #allocation3 [shape = 's32[2]{0}', space=sflag, size = 0x8, scoped, tag = 'scoped memory for tpu_custom_call.1']
    #allocation4 [shape = 's32[2]{0}', space=sflag, size = 0x8, scoped, tag = 'scoped memory for tpu_custom_call.1']
    #allocation5 [shape = 'u8[32768]{0}', space=vmem, size = 0x8000, scoped, tag = 'output window, operand 0']
    %8 = vsyncpa [#allocation3], 0
    %s9 = scalar_lea.sflag [#allocation3], 1
    %10 = vsyncpa %s9, 0
    %11 = vsyncpa [#allocation4], 0
    %s12 = scalar_lea.sflag [#allocation4], 1
    %13 = vsyncpa %s12, 0
    loop: start=0, step=1, limit=4
    $region2: #{tpu_custom_call.1} parent=1 // loop_pre_header
      _
    $region3: #{tpu_custom_call.1} parent=1 // loop_header
      %s15 = sphi 0, %s19
      %p16 = scmp.ge.s32.totalorder %s15, 4
      %s25 = sphi 0, %s27
      %s28 = sphi 0, %s25
      %s29 = sphi 0, %s28
      %s45 = sphi 0, %s29
      %s49 = sphi 0, %s49
      %s51 = sphi 0, %s49
      %s52 = sphi 0, %s51
      %s66 = sphi 0, %s52
      %s70 = sphi 0, %s70
      %s72 = sphi 0, %s70
      %s73 = sphi 0, %s72
      %s87 = sphi 0, %s73
      %s93 = sphi 0, %s95
      %s96 = sphi 0, %s93
      %s97 = sphi 0, %s96
      %s113 = sphi 0, %s97
    $region4: #{tpu_custom_call.1} parent=1 // loop_header_branch
      %18 = sbr.rel (%p16) target = $region8
    $region5: #{tpu_custom_call.1} parent=1 // loop_body
      %s20 = ssub.s32 %s15, 1
      %s21 = ssub.s32 %s15, 2
      %s22 = sadd.s32 %s15, 1
      %s23 = ssub.s32 %s15, %s22
      %p24 = scmp.eq.s32.totalorder %s23, 0
      %s26 = sadd.s32 %s25, 1
      %s27 = scalar_select %p24, %s25, %s26
      %p30 = pneg %p24
      %p31 = scmp.eq.s32.totalorder %s15, 1
      %p32 = por %p30, %p31
      %p33 = scmp.ne.s32.totalorder %s25, %s28
      %p34 = scmp.eq.s32.totalorder %s15, 0
      %p35 = por %p33, %p34
      %p36 = scmp.ne.s32.totalorder %s25, %s28
      %p37 = scmp.eq.s32.totalorder %s20, 1
      %p38 = por %p36, %p37
      %p39 = scmp.ne.s32.totalorder %s28, %s29
      %p40 = scmp.eq.s32.totalorder %s20, 0
      %p41 = por %p39, %p40
      %p42 = scmp.ne.s32.totalorder %s28, %s29
      %p43 = scmp.eq.s32.totalorder %s21, 1
      %p44 = por %p42, %p43
      %p46 = scmp.ne.s32.totalorder %s29, %s45
      %p47 = scmp.eq.s32.totalorder %s21, 0
      %p48 = por %p46, %p47
      %s50 = sadd.s32 %s49, 1
      %p53 = scmp.eq.s32.totalorder %s15, 1
      %p54 = scmp.ne.s32.totalorder %s49, %s51
      %p55 = scmp.eq.s32.totalorder %s15, 0
      %p56 = por %p54, %p55
      %p57 = scmp.ne.s32.totalorder %s49, %s51
      %p58 = scmp.eq.s32.totalorder %s20, 1
      %p59 = por %p57, %p58
      %p60 = scmp.ne.s32.totalorder %s51, %s52
      %p61 = scmp.eq.s32.totalorder %s20, 0
      %p62 = por %p60, %p61
      %p63 = scmp.ne.s32.totalorder %s51, %s52
      %p64 = scmp.eq.s32.totalorder %s21, 1
      %p65 = por %p63, %p64
      %p67 = scmp.ne.s32.totalorder %s52, %s66
      %p68 = scmp.eq.s32.totalorder %s21, 0
      %p69 = por %p67, %p68
      %s71 = sadd.s32 %s70, 1
      %p74 = scmp.eq.s32.totalorder %s15, 1
      %p75 = scmp.ne.s32.totalorder %s70, %s72
      %p76 = scmp.eq.s32.totalorder %s15, 0
      %p77 = por %p75, %p76
      %p78 = scmp.ne.s32.totalorder %s70, %s72
      %p79 = scmp.eq.s32.totalorder %s20, 1
      %p80 = por %p78, %p79
      %p81 = scmp.ne.s32.totalorder %s72, %s73
      %p82 = scmp.eq.s32.totalorder %s20, 0
      %p83 = por %p81, %p82
      %p84 = scmp.ne.s32.totalorder %s72, %s73
      %p85 = scmp.eq.s32.totalorder %s21, 1
      %p86 = por %p84, %p85
      %p88 = scmp.ne.s32.totalorder %s73, %s87
      %p89 = scmp.eq.s32.totalorder %s21, 0
      %p90 = por %p88, %p89
      %s91 = ssub.s32 %s15, %s22
      %p92 = scmp.eq.s32.totalorder %s91, 0
      %s94 = sadd.s32 %s93, 1
      %s95 = scalar_select %p92, %s93, %s94
      %p98 = pneg %p92
      %p99 = scmp.eq.s32.totalorder %s15, 1
      %p100 = por %p98, %p99
      %p101 = scmp.ne.s32.totalorder %s93, %s96
      %p102 = scmp.eq.s32.totalorder %s15, 0
      %p103 = por %p101, %p102
      %p104 = scmp.ne.s32.totalorder %s93, %s96
      %p105 = scmp.eq.s32.totalorder %s20, 1
      %p106 = por %p104, %p105
      %p107 = scmp.ne.s32.totalorder %s96, %s97
      %p108 = scmp.eq.s32.totalorder %s20, 0
      %p109 = por %p107, %p108
      %p110 = scmp.ne.s32.totalorder %s96, %s97
      %p111 = scmp.eq.s32.totalorder %s21, 1
      %p112 = por %p110, %p111
      %p114 = scmp.ne.s32.totalorder %s97, %s113
      %p115 = scmp.eq.s32.totalorder %s21, 0
      %p116 = por %p114, %p115
      %p117 = scmp.le.s32.totalorder 1, %s15
      %p118 = scmp.lt.s32.totalorder %s15, 3
      %p119 = pnand %p117, %p118
      %p120 = pneg %p119
      // Predicated region
      $region9: #{tpu_custom_call.1} parent=5 // pred_check
        _
      $region10: #{tpu_custom_call.1} parent=5 // pred_check_branch
        %122 = sbr.rel (%p119) target = $region12
      $region11: #{tpu_custom_call.1} parent=5 // pred_region
        %s123 = ssub.s32 %s15, 1
        // Predicated region
        $region13: #{tpu_custom_call.1} parent=11 // pred_check
          %p124 = pneg %p62
        $region14: #{tpu_custom_call.1} parent=11 // pred_check_branch
          %126 = sbr.rel (%p124) target = $region16
        $region15: #{tpu_custom_call.1} parent=11 // pred_region
          _
        $region16: #{tpu_custom_call.1} parent=11 // pred_fallthru
          _
        // Predicated region
        $region17: #{tpu_custom_call.1} parent=11 // pred_check
          %p127 = pneg %p83
        $region18: #{tpu_custom_call.1} parent=11 // pred_check_branch
          %129 = sbr.rel (%p127) target = $region20
        $region19: #{tpu_custom_call.1} parent=11 // pred_region
          _
        $region20: #{tpu_custom_call.1} parent=11 // pred_fallthru
          _
      $region12: #{tpu_custom_call.1} parent=5 // pred_fallthru
        _
      %p130 = scmp.lt.s32.totalorder %s15, 2
      // Predicated region
      $region21: #{tpu_custom_call.1} parent=5 // pred_check
        %p131 = pneg %p130
      $region22: #{tpu_custom_call.1} parent=5 // pred_check_branch
        %133 = sbr.rel (%p131) target = $region24
      $region23: #{tpu_custom_call.1} parent=5 // pred_region
        // Predicated region
        $region25: #{tpu_custom_call.1} parent=23 // pred_check
          %p134 = pneg %p35
        $region26: #{tpu_custom_call.1} parent=23 // pred_check_branch
          %136 = sbr.rel (%p134) target = $region28
        $region27: #{tpu_custom_call.1} parent=23 // pred_region
          %s137 = sand.u32 %s25, 1
          %s138 = scalar_lea.sflag [#allocation3], %s137
          %s139 = sand.u32 %s25, 1
          %s140 = smul.addr %s139, 64
          %s141 = scalar_lea.vmem [#allocation2], %s140
          %s142 = smul.u32 4, %s15
          %s144 = ssub.s32 1024, 1024
          %145 = vsyncadd %s138, %s144
          %s146 = smul.addr %s142, 2
          %s147 = smul.addr %s146, 128
          %s148 = scalar_lea.hbm %s0, %s147
          %s149 = sshll.u32 %s141, 4
          %s150 = int_to_ptr.vmem [resolvable:$true] %s149
          %155 = dma.hbm_to_vmem [thread:$0]  %s148, 1024, %s150, %s138, 128, 128, 8
        $region28: #{tpu_custom_call.1} parent=23 // pred_fallthru
          _
      $region24: #{tpu_custom_call.1} parent=5 // pred_fallthru
        _
      %p156 = scmp.le.s32.totalorder 1, %s15
      %p157 = scmp.lt.s32.totalorder %s15, 3
      %p158 = pnand %p156, %p157
      %p159 = pneg %p158
      // Predicated region
      $region29: #{tpu_custom_call.1} parent=5 // pred_check
        _
      $region30: #{tpu_custom_call.1} parent=5 // pred_check_branch
        %161 = sbr.rel (%p158) target = $region32
      $region31: #{tpu_custom_call.1} parent=5 // pred_region
        %s162 = ssub.s32 %s15, 1
        %s163 = sand.u32 %s28, 1
        %s164 = scalar_lea.sflag [#allocation3], %s163
        %s165 = sand.u32 %s28, 1
        %s166 = smul.addr %s165, 64
        %s167 = scalar_lea.vmem [#allocation2], %s166
        // Predicated region
        $region33: #{tpu_custom_call.1} parent=31 // pred_check
          %p168 = pneg %p41
        $region34: #{tpu_custom_call.1} parent=31 // pred_check_branch
          %170 = sbr.rel (%p168) target = $region36
        $region35: #{tpu_custom_call.1} parent=31 // pred_region
          %171 = dma.done %s164, 1024
        $region36: #{tpu_custom_call.1} parent=31 // pred_fallthru
          _
        %s172 = sand.u32 %s28, 1
        %s173 = scalar_lea.sflag [#allocation3], %s172
        %s174 = sand.u32 %s28, 1
        %s175 = smul.addr %s174, 64
        %s176 = scalar_lea.vmem [#allocation2], %s175
        %p177 = pneg %p41
        %p178 = pneg %p38
        %p179 = pneg %p62
        %p180 = pneg %p59
        %p181 = pneg %p83
        %p182 = pneg %p80
        %p183 = pneg %p109
        %p184 = pneg %p106
        %s185 = sand.u32 %s96, 1
        %s186 = scalar_lea.sflag [#allocation4], %s185
        %s187 = sand.u32 %s96, 1
        %s188 = smul.addr %s187, 32
        %s189 = scalar_lea.vmem [#allocation5], %s188
        %s190 = smul.u32 4, %s20
        %s191 = smul.u32 4, %s20
        %v192 = vld [vmem:[%s167] sm:$0xff]
        %v193 = vld [vmem:[%s167 + $0x8] sm:$0xff]
        %v194 = vld [vmem:[%s167 + $0x10] sm:$0xff]
        %v195 = vld [vmem:[%s167 + $0x18] sm:$0xff]
        %v196 = vld [vmem:[%s167 + $0x20] sm:$0xff]
        %v197 = vld [vmem:[%s167 + $0x28] sm:$0xff]
        %v198 = vld [vmem:[%s167 + $0x30] sm:$0xff]
        %v199 = vld [vmem:[%s167 + $0x38] sm:$0xff]
        %v200 = vld [vmem:[%s2] sm:$0xff]
        %v201 = vld [vmem:[%s2 + $0x8] sm:$0xff]
        %v202 = vld [vmem:[%s1] sm:$0xff]
        %vm203 = vcmask 130048
        %v205 = vsel %vm203, %v202, 0
        %207 = vmatprep.subr.mxu0 0.0
        %208 = vmatpush1.msra.mxu0 %v192
        %209 = vmatprep.subr.mxu0 0.0
        %210 = vmatpush1.msra.mxu0 %v193
        %211 = vmatprep.subr.mxu0 0.0
        %212 = vmatpush1.msra.mxu0 0.0
        %213 = vmatprep.subr.mxu0 0.0
        %214 = vmatpush1.msra.mxu0 0.0
        %215 = vmatprep.subr.mxu0 0.0
        %216 = vmatpush1.msra.mxu0 0.0
        %217 = vmatprep.subr.mxu0 0.0
        %218 = vmatpush1.msra.mxu0 0.0
        %219 = vmatprep.subr.mxu0 0.0
        %220 = vmatpush1.msra.mxu0 0.0
        %221 = vmatprep.subr.mxu0 0.0
        %222 = vmatpush1.msra.mxu0 0.0
        %223 = vmatprep.subr.mxu0 0.0
        %224 = vmatpush1.msra.mxu0 0.0
        %225 = vmatprep.subr.mxu0 0.0
        %226 = vmatpush1.msra.mxu0 0.0
        %227 = vmatprep.subr.mxu0 0.0
        %228 = vmatpush1.msra.mxu0 0.0
        %229 = vmatprep.subr.mxu0 0.0
        %230 = vmatpush1.msra.mxu0 0.0
        %231 = vmatprep.subr.mxu0 0.0
        %232 = vmatpush1.msra.mxu0 0.0
        %233 = vmatprep.subr.mxu0 0.0
        %234 = vmatpush1.msra.mxu0 0.0
        %235 = vmatprep.subr.mxu0 0.0
        %236 = vmatpush1.msra.mxu0 0.0
        %237 = vmatprep.subr.mxu0 0.0
        %238 = vmatpush1.msra.mxu0 0.0
        %239 = vmatprep.subr.mxu0 0.0
        %240 = vmatpush1.msra.mxu0 0.0
        %241 = vmatprep.subr.mxu0 0.0
        %242 = vmatpush1.msra.mxu0 0.0
        %243 = vmatprep.subr.mxu0 0.0
        %244 = vmatpush1.msra.mxu0 0.0
        %245 = vmatprep.subr.mxu0 0.0
        %246 = vmatpush1.msra.mxu0 0.0
        %247 = vmatprep.subr.mxu0 0.0
        %248 = vmatpush1.msra.mxu0 0.0
        %249 = vmatprep.subr.mxu0 0.0
        %250 = vmatpush1.msra.mxu0 0.0
        %251 = vmatprep.subr.mxu0 0.0
        %252 = vmatpush1.msra.mxu0 0.0
        %253 = vmatprep.subr.mxu0 0.0
        %254 = vmatpush1.msra.mxu0 0.0
        %255 = vmatprep.subr.mxu0 0.0
        %256 = vmatpush1.msra.mxu0 0.0
        %257 = vmatprep.subr.mxu0 0.0
        %258 = vmatpush1.msra.mxu0 0.0
        %259 = vmatprep.subr.mxu0 0.0
        %260 = vmatpush1.msra.mxu0 0.0
        %261 = vmatprep.subr.mxu0 0.0
        %262 = vmatpush1.msra.mxu0 0.0
        %263 = vmatprep.subr.mxu0 0.0
        %264 = vmatpush1.msra.mxu0 0.0
        %265 = vmatprep.subr.mxu0 0.0
        %266 = vmatpush1.msra.mxu0 0.0
        %267 = vmatprep.subr.mxu0 0.0
        %268 = vmatpush1.msra.mxu0 0.0
        %269 = vmatprep.subr.mxu0 0.0
        %270 = vmatpush1.msra.mxu0 0.0
        %271 = vmatprep.mubr.f32.mxu0 0.0
        %272 = vmatmul.mubr.f32.gmra.mrb[0].mxu0 %v205
        %v273 = vpop.f32.mrb[0].mxu0
        %v274 = vadd.f32 0.0, %v273
        %v275 = vpop.f32.mrb[0].mxu0
        %276 = vdwg.mxu0
        %277 = vmatprep.subr.mxu0 0.0
        %278 = vmatpush1.msra.mxu0 %v194
        %279 = vmatprep.subr.mxu0 0.0
        %280 = vmatpush1.msra.mxu0 %v195
        %281 = vmatprep.subr.mxu0 0.0
        %282 = vmatpush1.msra.mxu0 0.0
        %283 = vmatprep.subr.mxu0 0.0
        %284 = vmatpush1.msra.mxu0 0.0
        %285 = vmatprep.subr.mxu0 0.0
        %286 = vmatpush1.msra.mxu0 0.0
        %287 = vmatprep.subr.mxu0 0.0
        %288 = vmatpush1.msra.mxu0 0.0
        %289 = vmatprep.subr.mxu0 0.0
        %290 = vmatpush1.msra.mxu0 0.0
        %291 = vmatprep.subr.mxu0 0.0
        %292 = vmatpush1.msra.mxu0 0.0
        %293 = vmatprep.subr.mxu0 0.0
        %294 = vmatpush1.msra.mxu0 0.0
        %295 = vmatprep.subr.mxu0 0.0
        %296 = vmatpush1.msra.mxu0 0.0
        %297 = vmatprep.subr.mxu0 0.0
        %298 = vmatpush1.msra.mxu0 0.0
        %299 = vmatprep.subr.mxu0 0.0
        %300 = vmatpush1.msra.mxu0 0.0
        %301 = vmatprep.subr.mxu0 0.0
        %302 = vmatpush1.msra.mxu0 0.0
        %303 = vmatprep.subr.mxu0 0.0
        %304 = vmatpush1.msra.mxu0 0.0
        %305 = vmatprep.subr.mxu0 0.0
        %306 = vmatpush1.msra.mxu0 0.0
        %307 = vmatprep.subr.mxu0 0.0
        %308 = vmatpush1.msra.mxu0 0.0
        %309 = vmatprep.subr.mxu0 0.0
        %310 = vmatpush1.msra.mxu0 0.0
        %311 = vmatprep.subr.mxu0 0.0
        %312 = vmatpush1.msra.mxu0 0.0
        %313 = vmatprep.subr.mxu0 0.0
        %314 = vmatpush1.msra.mxu0 0.0
        %315 = vmatprep.subr.mxu0 0.0
        %316 = vmatpush1.msra.mxu0 0.0
        %317 = vmatprep.subr.mxu0 0.0
        %318 = vmatpush1.msra.mxu0 0.0
        %319 = vmatprep.subr.mxu0 0.0
        %320 = vmatpush1.msra.mxu0 0.0
        %321 = vmatprep.subr.mxu0 0.0
        %322 = vmatpush1.msra.mxu0 0.0
        %323 = vmatprep.subr.mxu0 0.0
        %324 = vmatpush1.msra.mxu0 0.0
        %325 = vmatprep.subr.mxu0 0.0
        %326 = vmatpush1.msra.mxu0 0.0
        %327 = vmatprep.subr.mxu0 0.0
        %328 = vmatpush1.msra.mxu0 0.0
        %329 = vmatprep.subr.mxu0 0.0
        %330 = vmatpush1.msra.mxu0 0.0
        %331 = vmatprep.subr.mxu0 0.0
        %332 = vmatpush1.msra.mxu0 0.0
        %333 = vmatprep.subr.mxu0 0.0
        %334 = vmatpush1.msra.mxu0 0.0
        %335 = vmatprep.subr.mxu0 0.0
        %336 = vmatpush1.msra.mxu0 0.0
        %337 = vmatprep.subr.mxu0 0.0
        %338 = vmatpush1.msra.mxu0 0.0
        %339 = vmatprep.subr.mxu0 0.0
        %340 = vmatpush1.msra.mxu0 0.0
        %341 = vmatprep.mubr.f32.mxu0 0.0
        %342 = vmatmul.mubr.f32.gmra.mrb[0].mxu0 %v205
        %v343 = vpop.f32.mrb[0].mxu0
        %v344 = vadd.f32 0.0, %v343
        %v345 = vpop.f32.mrb[0].mxu0
        %346 = vdwg.mxu0
        %347 = vmatprep.subr.mxu0 0.0
        %348 = vmatpush1.msra.mxu0 %v196
        %349 = vmatprep.subr.mxu0 0.0
        %350 = vmatpush1.msra.mxu0 %v197
        %351 = vmatprep.subr.mxu0 0.0
        %352 = vmatpush1.msra.mxu0 0.0
        %353 = vmatprep.subr.mxu0 0.0
        %354 = vmatpush1.msra.mxu0 0.0
        %355 = vmatprep.subr.mxu0 0.0
        %356 = vmatpush1.msra.mxu0 0.0
        %357 = vmatprep.subr.mxu0 0.0
        %358 = vmatpush1.msra.mxu0 0.0
        %359 = vmatprep.subr.mxu0 0.0
        %360 = vmatpush1.msra.mxu0 0.0
        %361 = vmatprep.subr.mxu0 0.0
        %362 = vmatpush1.msra.mxu0 0.0
        %363 = vmatprep.subr.mxu0 0.0
        %364 = vmatpush1.msra.mxu0 0.0
        %365 = vmatprep.subr.mxu0 0.0
        %366 = vmatpush1.msra.mxu0 0.0
        %367 = vmatprep.subr.mxu0 0.0
        %368 = vmatpush1.msra.mxu0 0.0
        %369 = vmatprep.subr.mxu0 0.0
        %370 = vmatpush1.msra.mxu0 0.0
        %371 = vmatprep.subr.mxu0 0.0
        %372 = vmatpush1.msra.mxu0 0.0
        %373 = vmatprep.subr.mxu0 0.0
        %374 = vmatpush1.msra.mxu0 0.0
        %375 = vmatprep.subr.mxu0 0.0
        %376 = vmatpush1.msra.mxu0 0.0
        %377 = vmatprep.subr.mxu0 0.0
        %378 = vmatpush1.msra.mxu0 0.0
        %379 = vmatprep.subr.mxu0 0.0
        %380 = vmatpush1.msra.mxu0 0.0
        %381 = vmatprep.subr.mxu0 0.0
        %382 = vmatpush1.msra.mxu0 0.0
        %383 = vmatprep.subr.mxu0 0.0
        %384 = vmatpush1.msra.mxu0 0.0
        %385 = vmatprep.subr.mxu0 0.0
        %386 = vmatpush1.msra.mxu0 0.0
        %387 = vmatprep.subr.mxu0 0.0
        %388 = vmatpush1.msra.mxu0 0.0
        %389 = vmatprep.subr.mxu0 0.0
        %390 = vmatpush1.msra.mxu0 0.0
        %391 = vmatprep.subr.mxu0 0.0
        %392 = vmatpush1.msra.mxu0 0.0
        %393 = vmatprep.subr.mxu0 0.0
        %394 = vmatpush1.msra.mxu0 0.0
        %395 = vmatprep.subr.mxu0 0.0
        %396 = vmatpush1.msra.mxu0 0.0
        %397 = vmatprep.subr.mxu0 0.0
        %398 = vmatpush1.msra.mxu0 0.0
        %399 = vmatprep.subr.mxu0 0.0
        %400 = vmatpush1.msra.mxu0 0.0
        %401 = vmatprep.subr.mxu0 0.0
        %402 = vmatpush1.msra.mxu0 0.0
        %403 = vmatprep.subr.mxu0 0.0
        %404 = vmatpush1.msra.mxu0 0.0
        %405 = vmatprep.subr.mxu0 0.0
        %406 = vmatpush1.msra.mxu0 0.0
        %407 = vmatprep.subr.mxu0 0.0
        %408 = vmatpush1.msra.mxu0 0.0
        %409 = vmatprep.subr.mxu0 0.0
        %410 = vmatpush1.msra.mxu0 0.0
        %411 = vmatprep.mubr.f32.mxu0 0.0
        %412 = vmatmul.mubr.f32.gmra.mrb[0].mxu0 %v205
        %v413 = vpop.f32.mrb[0].mxu0
        %v414 = vadd.f32 0.0, %v413
        %v415 = vpop.f32.mrb[0].mxu0
        %416 = vdwg.mxu0
        %417 = vmatprep.subr.mxu0 0.0
        %418 = vmatpush1.msra.mxu0 %v198
        %419 = vmatprep.subr.mxu0 0.0
        %420 = vmatpush1.msra.mxu0 %v199
        %421 = vmatprep.subr.mxu0 0.0
        %422 = vmatpush1.msra.mxu0 0.0
        %423 = vmatprep.subr.mxu0 0.0
        %424 = vmatpush1.msra.mxu0 0.0
        %425 = vmatprep.subr.mxu0 0.0
        %426 = vmatpush1.msra.mxu0 0.0
        %427 = vmatprep.subr.mxu0 0.0
        %428 = vmatpush1.msra.mxu0 0.0
        %429 = vmatprep.subr.mxu0 0.0
        %430 = vmatpush1.msra.mxu0 0.0
        %431 = vmatprep.subr.mxu0 0.0
        %432 = vmatpush1.msra.mxu0 0.0
        %433 = vmatprep.subr.mxu0 0.0
        %434 = vmatpush1.msra.mxu0 0.0
        %435 = vmatprep.subr.mxu0 0.0
        %436 = vmatpush1.msra.mxu0 0.0
        %437 = vmatprep.subr.mxu0 0.0
        %438 = vmatpush1.msra.mxu0 0.0
        %439 = vmatprep.subr.mxu0 0.0
        %440 = vmatpush1.msra.mxu0 0.0
        %441 = vmatprep.subr.mxu0 0.0
        %442 = vmatpush1.msra.mxu0 0.0
        %443 = vmatprep.subr.mxu0 0.0
        %444 = vmatpush1.msra.mxu0 0.0
        %445 = vmatprep.subr.mxu0 0.0
        %446 = vmatpush1.msra.mxu0 0.0
        %447 = vmatprep.subr.mxu0 0.0
        %448 = vmatpush1.msra.mxu0 0.0
        %449 = vmatprep.subr.mxu0 0.0
        %450 = vmatpush1.msra.mxu0 0.0
        %451 = vmatprep.subr.mxu0 0.0
        %452 = vmatpush1.msra.mxu0 0.0
        %453 = vmatprep.subr.mxu0 0.0
        %454 = vmatpush1.msra.mxu0 0.0
        %455 = vmatprep.subr.mxu0 0.0
        %456 = vmatpush1.msra.mxu0 0.0
        %457 = vmatprep.subr.mxu0 0.0
        %458 = vmatpush1.msra.mxu0 0.0
        %459 = vmatprep.subr.mxu0 0.0
        %460 = vmatpush1.msra.mxu0 0.0
        %461 = vmatprep.subr.mxu0 0.0
        %462 = vmatpush1.msra.mxu0 0.0
        %463 = vmatprep.subr.mxu0 0.0
        %464 = vmatpush1.msra.mxu0 0.0
        %465 = vmatprep.subr.mxu0 0.0
        %466 = vmatpush1.msra.mxu0 0.0
        %467 = vmatprep.subr.mxu0 0.0
        %468 = vmatpush1.msra.mxu0 0.0
        %469 = vmatprep.subr.mxu0 0.0
        %470 = vmatpush1.msra.mxu0 0.0
        %471 = vmatprep.subr.mxu0 0.0
        %472 = vmatpush1.msra.mxu0 0.0
        %473 = vmatprep.subr.mxu0 0.0
        %474 = vmatpush1.msra.mxu0 0.0
        %475 = vmatprep.subr.mxu0 0.0
        %476 = vmatpush1.msra.mxu0 0.0
        %477 = vmatprep.subr.mxu0 0.0
        %478 = vmatpush1.msra.mxu0 0.0
        %479 = vmatprep.subr.mxu0 0.0
        %480 = vmatpush1.msra.mxu0 0.0
        %481 = vmatprep.mubr.f32.mxu0 0.0
        %482 = vmatmul.mubr.f32.gmra.mrb[0].mxu0 %v205
        %v483 = vpop.f32.mrb[0].mxu0
        %v484 = vadd.f32 0.0, %v483
        %v485 = vpop.f32.mrb[0].mxu0
        %486 = vdwg.mxu0
        %v488 = vsel %vm203, %v274, 0
        %v491 = vsel %vm203, %v344, 0
        %v494 = vsel %vm203, %v414, 0
        %v497 = vsel %vm203, %v484, 0
        %499 = vmatprep.subr.mxu0 0.0
        %500 = vmatpush1.msra.mxu0 %v200
        %501 = vmatprep.subr.mxu0 0.0
        %502 = vmatpush1.msra.mxu0 %v201
        %503 = vmatprep.subr.mxu0 0.0
        %504 = vmatpush1.msra.mxu0 0.0
        %505 = vmatprep.subr.mxu0 0.0
        %506 = vmatpush1.msra.mxu0 0.0
        %507 = vmatprep.subr.mxu0 0.0
        %508 = vmatpush1.msra.mxu0 0.0
        %509 = vmatprep.subr.mxu0 0.0
        %510 = vmatpush1.msra.mxu0 0.0
        %511 = vmatprep.subr.mxu0 0.0
        %512 = vmatpush1.msra.mxu0 0.0
        %513 = vmatprep.subr.mxu0 0.0
        %514 = vmatpush1.msra.mxu0 0.0
        %515 = vmatprep.subr.mxu0 0.0
        %516 = vmatpush1.msra.mxu0 0.0
        %517 = vmatprep.subr.mxu0 0.0
        %518 = vmatpush1.msra.mxu0 0.0
        %519 = vmatprep.subr.mxu0 0.0
        %520 = vmatpush1.msra.mxu0 0.0
        %521 = vmatprep.subr.mxu0 0.0
        %522 = vmatpush1.msra.mxu0 0.0
        %523 = vmatprep.subr.mxu0 0.0
        %524 = vmatpush1.msra.mxu0 0.0
        %525 = vmatprep.subr.mxu0 0.0
        %526 = vmatpush1.msra.mxu0 0.0
        %527 = vmatprep.subr.mxu0 0.0
        %528 = vmatpush1.msra.mxu0 0.0
        %529 = vmatprep.subr.mxu0 0.0
        %530 = vmatpush1.msra.mxu0 0.0
        %531 = vmatprep.subr.mxu0 0.0
        %532 = vmatpush1.msra.mxu0 0.0
        %533 = vmatprep.subr.mxu0 0.0
        %534 = vmatpush1.msra.mxu0 0.0
        %535 = vmatprep.subr.mxu0 0.0
        %536 = vmatpush1.msra.mxu0 0.0
        %537 = vmatprep.subr.mxu0 0.0
        %538 = vmatpush1.msra.mxu0 0.0
        %539 = vmatprep.subr.mxu0 0.0
        %540 = vmatpush1.msra.mxu0 0.0
        %541 = vmatprep.subr.mxu0 0.0
        %542 = vmatpush1.msra.mxu0 0.0
        %543 = vmatprep.subr.mxu0 0.0
        %544 = vmatpush1.msra.mxu0 0.0
        %545 = vmatprep.subr.mxu0 0.0
        %546 = vmatpush1.msra.mxu0 0.0
        %547 = vmatprep.subr.mxu0 0.0
        %548 = vmatpush1.msra.mxu0 0.0
        %549 = vmatprep.subr.mxu0 0.0
        %550 = vmatpush1.msra.mxu0 0.0
        %551 = vmatprep.subr.mxu0 0.0
        %552 = vmatpush1.msra.mxu0 0.0
        %553 = vmatprep.subr.mxu0 0.0
        %554 = vmatpush1.msra.mxu0 0.0
        %555 = vmatprep.subr.mxu0 0.0
        %556 = vmatpush1.msra.mxu0 0.0
        %557 = vmatprep.subr.mxu0 0.0
        %558 = vmatpush1.msra.mxu0 0.0
        %559 = vmatprep.subr.mxu0 0.0
        %560 = vmatpush1.msra.mxu0 0.0
        %561 = vmatprep.subr.mxu0 0.0
        %562 = vmatpush1.msra.mxu0 0.0
        %563 = vmatprep.mubr.f32.mxu0 0.0
        %564 = vmatmul.mubr.f32.gmra.mrb[0].mxu0 %v488
        %v565 = vpop.f32.mrb[0].mxu0
        %v566 = vadd.f32 0.0, %v565
        %v567 = vpop.f32.mrb[0].mxu0
        %568 = vmatprep.mubr.f32.mxu0 0.0
        %569 = vmatmul.mubr.f32.gmra.mrb[0].mxu0 %v491
        %v570 = vpop.f32.mrb[0].mxu0
        %v571 = vadd.f32 0.0, %v570
        %v572 = vpop.f32.mrb[0].mxu0
        %573 = vmatprep.mubr.f32.mxu0 0.0
        %574 = vmatmul.mubr.f32.gmra.mrb[0].mxu0 %v494
        %v575 = vpop.f32.mrb[0].mxu0
        %v576 = vadd.f32 0.0, %v575
        %v577 = vpop.f32.mrb[0].mxu0
        %578 = vmatprep.mubr.f32.mxu0 0.0
        %579 = vmatmul.mubr.f32.gmra.mrb[0].mxu0 %v497
        %v580 = vpop.f32.mrb[0].mxu0
        %v581 = vadd.f32 0.0, %v580
        %v582 = vpop.f32.mrb[0].mxu0
        %583 = vdwg.mxu0
        %vm584 = vcmask 64512
        %585 = vst.msk [vmem:[%s189] sm:$0xff] %vm584, %v566
        %586 = vst.msk [vmem:[%s189 + $0x8] sm:$0xff] %vm584, %v571
        %587 = vst.msk [vmem:[%s189 + $0x10] sm:$0xff] %vm584, %v576
        %588 = vst.msk [vmem:[%s189 + $0x18] sm:$0xff] %vm584, %v581
        %s589 = sand.u32 %s96, 1
        %s590 = scalar_lea.sflag [#allocation4], %s589
        %s591 = sand.u32 %s96, 1
        %s592 = smul.addr %s591, 32
        %s593 = scalar_lea.vmem [#allocation5], %s592
        // Predicated region
        $region37: #{tpu_custom_call.1} parent=31 // pred_check
          %p594 = pneg %p106
        $region38: #{tpu_custom_call.1} parent=31 // pred_check_branch
          %596 = sbr.rel (%p594) target = $region40
        $region39: #{tpu_custom_call.1} parent=31 // pred_region
          %s597 = smul.u32 4, %s20
          %s599 = ssub.s32 512, 512
          %600 = vsyncadd %s590, %s599
          %s601 = smul.addr %s597, 128
          %s602 = scalar_lea.hbm %s3, %s601
          %s603 = sshll.u32 %s593, 4
          %s604 = int_to_ptr.vmem [resolvable:$true] %s603
          %609 = dma.vmem_to_hbm [thread:$0]  %s604, 512, %s602, %s590, 128, 128, 8
        $region40: #{tpu_custom_call.1} parent=31 // pred_fallthru
          _
      $region32: #{tpu_custom_call.1} parent=5 // pred_fallthru
        _
      %p610 = scmp.le.s32.totalorder 2, %s15
      // Predicated region
      $region41: #{tpu_custom_call.1} parent=5 // pred_check
        %p611 = pneg %p610
      $region42: #{tpu_custom_call.1} parent=5 // pred_check_branch
        %613 = sbr.rel (%p611) target = $region44
      $region43: #{tpu_custom_call.1} parent=5 // pred_region
        %s614 = ssub.s32 %s15, 2
        // Predicated region
        $region45: #{tpu_custom_call.1} parent=43 // pred_check
          %p615 = pneg %p112
        $region46: #{tpu_custom_call.1} parent=43 // pred_check_branch
          %617 = sbr.rel (%p615) target = $region48
        $region47: #{tpu_custom_call.1} parent=43 // pred_region
          %s618 = sand.u32 %s97, 1
          %s619 = scalar_lea.sflag [#allocation4], %s618
          %s620 = sand.u32 %s97, 1
          %s621 = smul.addr %s620, 32
          %s622 = scalar_lea.vmem [#allocation5], %s621
          %623 = dma.done %s619, 512
        $region48: #{tpu_custom_call.1} parent=43 // pred_fallthru
          _
      $region44: #{tpu_custom_call.1} parent=5 // pred_fallthru
        _
    $region6: #{tpu_custom_call.1} parent=1 // loop_footer
      %s19 = sadd.s32 1, %s15
    $region7: #{tpu_custom_call.1} parent=1 // loop_footer_branch
      %14 = sbr.rel target = $region3
    $region8: #{tpu_custom_call.1} parent=1 // loop_exit
      _
    %624 = vsyncpa [#allocation3], 1
    %s625 = scalar_lea.sflag [#allocation3], 1
    %626 = vsyncpa %s625, 1
    %627 = vsyncpa [#allocation4], 1
    %s628 = scalar_lea.sflag [#allocation4], 1
    %629 = vsyncpa %s628, 1

</llo_original>
